<compile_context>
chip_gen: v6e
topology: v6e:2x2x1
jax: 0.10.0
libtpu: 0.0.40
codegen_flags: <defaults>
</compile_context>

<pallas_src>
import functools

import jax
import jax.numpy as jnp
from jax.experimental import pallas as pl
from jax.experimental.pallas import tpu as pltpu


def _highway_fused_kernel(x_ref, w_ref, b_ref, o_ref, xs_ref):
    """One grid step = one highway layer applied to one batch tile.

    x_ref : (TM, S)   f32    input batch tile (only read at layer 0)
    w_ref : (S, 2S)   bf16   packed [W_trans^T | W_gate^T] for this layer
    b_ref : (1, 2S)   f32    packed [b_trans   | b_gate]
    o_ref : (TM, S)          output tile (written at last layer)
    xs_ref: (TM, S)   f32    VMEM scratch carrying x across layers
    """
    layer = pl.program_id(1)
    S = x_ref.shape[-1]

    @pl.when(layer == 0)
    def _():
        xs_ref[...] = x_ref[...].astype(jnp.float32)

    x = xs_ref[...]

    # Single fused matmul on the MXU: [TM, S] @ [S, 2S] -> [TM, 2S], f32 acc.
    y = jnp.dot(x.astype(w_ref.dtype), w_ref[...],
                preferred_element_type=jnp.float32) + b_ref[...]

    h = jnp.maximum(y[:, :S], 0.0)      # transform branch (relu)
    g = jax.nn.sigmoid(y[:, S:])        # gate branch (sigmoid, EUP)

    # g*h + (1-g)*x  ==  x + g*(h - x)   (one fewer mul/sub, no (1-g) temp)
    x_new = x + g * (h - x)
    xs_ref[...] = x_new

    @pl.when(layer == pl.num_programs(1) - 1)
    def _():
        o_ref[...] = x_new.astype(o_ref.dtype)


def _pick_tile_m(B):
    """Batch tile: full batch for small B, otherwise a pipelineable tile."""
    if B <= 512:
        return B
    for tm in (512, 256, 128, 64, 32, 16, 8):
        if B % tm == 0:
            return tm
    return B


def highway_forward(x, params):
    """x: [B, S] f32.  params: dict with packed 'w' [L, S, 2S] bf16, 'b' [L, 1, 2S] f32."""
    B, S = x.shape
    w_all = params["w"]
    b_all = params["b"]
    L = w_all.shape[0]
    TM = _pick_tile_m(B)

    grid = (B // TM, L)  # batch tiles (parallel) x layers (arbitrary, carried)

    return pl.pallas_call(
        _highway_fused_kernel,
        out_shape=jax.ShapeDtypeStruct((B, S), x.dtype),
        grid_spec=pltpu.PrefetchScalarGridSpec(
            num_scalar_prefetch=0,
            grid=grid,
            in_specs=[
                pl.BlockSpec((TM, S), lambda b, l: (b, 0)),          # x
                pl.BlockSpec((None, S, 2 * S), lambda b, l: (l, 0, 0)),  # packed W
                pl.BlockSpec((None, 1, 2 * S), lambda b, l: (l, 0, 0)),  # packed b
            ],
            out_specs=pl.BlockSpec((TM, S), lambda b, l: (b, 0)),
            scratch_shapes=[pltpu.VMEM((TM, S), jnp.float32)],
        ),
        compiler_params=pltpu.CompilerParams(
            dimension_semantics=("parallel", "arbitrary"),
        ),
    )(x, w_all, b_all)


def init_highway_params(key, size, n_layers):
    """Mimics nn.Linear default init (uniform +-1/sqrt(size)).

    Packs per layer:  W = [W_trans^T | W_gate^T]  -> [size, 2*size] (bf16)
                      b = [b_trans   | b_gate  ]  -> [1, 2*size]    (f32)
    """
    bound = 1.0 / jnp.sqrt(size)
    w_list, b_list = [], []
    for _ in range(n_layers):
        k1, k2, k3, k4, key = jax.random.split(key, 5)
        wt = jax.random.uniform(k1, (size, size), jnp.float32, -bound, bound).T
        bt = jax.random.uniform(k2, (size,), jnp.float32, -bound, bound)
        wg = jax.random.uniform(k3, (size, size), jnp.float32, -bound, bound).T
        bg = jax.random.uniform(k4, (size,), jnp.float32, -bound, bound)
        w_list.append(jnp.concatenate([wt, wg], axis=1).astype(jnp.bfloat16))
        b_list.append(jnp.concatenate([bt, bg]).reshape(1, 2 * size))
    return {"w": jnp.stack(w_list), "b": jnp.stack(b_list)}


def highway_reference(x, params):
    """Plain-JAX f32 reference using the same (bf16-stored) weights."""
    L, S = params["w"].shape[0], x.shape[-1]
    for i in range(L):
        w = params["w"][i].astype(jnp.float32)
        b = params["b"][i]
        y = x @ w + b
        h = jnp.maximum(y[:, :S], 0.0)
        g = jax.nn.sigmoid(y[:, S:])
        x = g * h + (1.0 - g) * x
    return x


if __name__ == "__main__":
    size = 128
    batch = 8
    n_layers = 2

    key = jax.random.PRNGKey(0)
    kx, kp = jax.random.split(key)
    x = jax.random.normal(kx, (batch, size), jnp.float32)
    params = init_highway_params(kp, size, n_layers)

    fwd = jax.jit(highway_forward)
    out = fwd(x, params)
    jax.block_until_ready(out)

    ref = highway_reference(x, params)
    assert out.shape == (batch, size)
    # bf16 MXU inputs with f32 accumulation -> loosened tolerance vs f32 ref.
    assert jnp.allclose(out, ref, atol=2e-2, rtol=2e-2), "mismatch vs reference"

    print("KERNEL_OK")
</pallas_src>

<mosaic_0001>
module attributes {stable_mosaic.version = 11 : i64} {
  func.func @_highway_fused_kernel(%arg0: i32, %arg1: i32, %arg2: memref<8x128xf32, #tpu.memory_space<vmem>>, %arg3: memref<1x128x256xbf16, #tpu.memory_space<vmem>>, %arg4: memref<1x1x256xf32, #tpu.memory_space<vmem>>, %arg5: memref<8x128xf32, #tpu.memory_space<vmem>>, %arg6: memref<8x128xf32, #tpu.memory_space<vmem>>) attributes {dimension_semantics = [#tpu.dimension_semantics<parallel>, #tpu.dimension_semantics<arbitrary>], iteration_bounds = array<i64: 1, 2>, scalar_prefetch = 0 : i64, scratch_operands = 1 : i64, tpu.core_type = #tpu.core_type<tc>, window_params = [{transform_indices = @transform_0, window_bounds = array<i64: 8, 128>}, {transform_indices = @transform_1, window_bounds = array<i64: 1, 128, 256>}, {transform_indices = @transform_2, window_bounds = array<i64: 1, 1, 256>}, {transform_indices = @transform_3, window_bounds = array<i64: 8, 128>}]} {
    %c0_i32 = arith.constant 0 : i32
    %0 = arith.cmpi eq, %arg1, %c0_i32 : i32
    %1 = arith.extui %0 : i1 to i32
    %c0_i32_0 = arith.constant 0 : i32
    %2 = arith.cmpi ne, %1, %c0_i32_0 : i32
    scf.if %2 {
      %c0_13 = arith.constant 0 : index
      %c0_14 = arith.constant 0 : index
      %28 = vector.load %arg2[%c0_13, %c0_14] : memref<8x128xf32, #tpu.memory_space<vmem>>, vector<8x128xf32>
      %c0_15 = arith.constant 0 : index
      %c0_16 = arith.constant 0 : index
      %29 = vector.load %arg6[%c0_15, %c0_16] : memref<8x128xf32, #tpu.memory_space<vmem>>, vector<8x128xf32>
      tpu.vector_store %arg6[%c0_15, %c0_16], %28 {strides = array<i32>} : memref<8x128xf32, #tpu.memory_space<vmem>>, vector<8x128xf32>,
    } else {
    }
    %c0 = arith.constant 0 : index
    %c0_1 = arith.constant 0 : index
    %3 = vector.load %arg6[%c0, %c0_1] : memref<8x128xf32, #tpu.memory_space<vmem>>, vector<8x128xf32>
    %4 = arith.truncf %3 : vector<8x128xf32> to vector<8x128xbf16>
    %c0_2 = arith.constant 0 : index
    %c0_3 = arith.constant 0 : index
    %c0_4 = arith.constant 0 : index
    %5 = vector.load %arg3[%c0_2, %c0_3, %c0_4] : memref<1x128x256xbf16, #tpu.memory_space<vmem>>, vector<1x128x256xbf16>
    %6 = vector.shape_cast %5 : vector<1x128x256xbf16> to vector<128x256xbf16>
    %cst = arith.constant dense<0.000000e+00> : vector<8x256xf32>
    %7 = tpu.matmul %4, %6, %cst {dimension_numbers = #tpu.dot_dimension_numbers<[1], [0], [0], [1], [0, 0, 1, 1], [], []>} : vector<8x128xbf16>, vector<128x256xbf16>, vector<8x256xf32> -> vector<8x256xf32>
    %c0_5 = arith.constant 0 : index
    %c0_6 = arith.constant 0 : index
    %c0_7 = arith.constant 0 : index
    %8 = vector.load %arg4[%c0_5, %c0_6, %c0_7] : memref<1x1x256xf32, #tpu.memory_space<vmem>>, vector<1x1x256xf32>
    %9 = vector.shape_cast %8 : vector<1x1x256xf32> to vector<1x256xf32>
    %10 = vector.broadcast %9 : vector<1x256xf32> to vector<8x256xf32>
    %11 = arith.addf %7, %10 : vector<8x256xf32>
    %12 = vector.extract_strided_slice %11 {offsets = [0, 0], sizes = [8, 128], strides = [1, 1]} : vector<8x256xf32> to vector<8x128xf32>
    %cst_8 = arith.constant 0.000000e+00 : f32
    %13 = vector.broadcast %cst_8 : f32 to vector<8x128xf32>
    %14 = arith.maximumf %12, %13 : vector<8x128xf32>
    %15 = vector.extract_strided_slice %11 {offsets = [0, 128], sizes = [8, 128], strides = [1, 1]} : vector<8x256xf32> to vector<8x128xf32>
    %16 = arith.negf %15 : vector<8x128xf32>
    %17 = math.exp %16 : vector<8x128xf32>
    %cst_9 = arith.constant 1.000000e+00 : f32
    %18 = vector.broadcast %cst_9 : f32 to vector<8x128xf32>
    %19 = arith.addf %18, %17 : vector<8x128xf32>
    %20 = arith.divf %18, %19 : vector<8x128xf32>
    %21 = arith.subf %14, %3 : vector<8x128xf32>
    %22 = arith.mulf %20, %21 : vector<8x128xf32>
    %23 = arith.addf %3, %22 : vector<8x128xf32>
    %c0_10 = arith.constant 0 : index
    %c0_11 = arith.constant 0 : index
    %24 = vector.load %arg6[%c0_10, %c0_11] : memref<8x128xf32, #tpu.memory_space<vmem>>, vector<8x128xf32>
    tpu.vector_store %arg6[%c0_10, %c0_11], %23 {strides = array<i32>} : memref<8x128xf32, #tpu.memory_space<vmem>>, vector<8x128xf32>,
    %c1_i32 = arith.constant 1 : i32
    %25 = arith.cmpi eq, %arg1, %c1_i32 : i32
    %26 = arith.extui %25 : i1 to i32
    %c0_i32_12 = arith.constant 0 : i32
    %27 = arith.cmpi ne, %26, %c0_i32_12 : i32
    scf.if %27 {
      %c0_13 = arith.constant 0 : index
      %c0_14 = arith.constant 0 : index
      %28 = vector.load %arg5[%c0_13, %c0_14] : memref<8x128xf32, #tpu.memory_space<vmem>>, vector<8x128xf32>
      tpu.vector_store %arg5[%c0_13, %c0_14], %23 {strides = array<i32>} : memref<8x128xf32, #tpu.memory_space<vmem>>, vector<8x128xf32>,
    } else {
    }
    return
  }
  func.func @transform_0(%arg0: i32, %arg1: i32) -> (i32, i32) {
    %c0_i32 = arith.constant 0 : i32
    %c0_i32_0 = arith.constant 0 : i32
    return %arg0, %c0_i32 : i32, i32
  }
  func.func @transform_1(%arg0: i32, %arg1: i32) -> (i32, i32, i32) {
    %c0_i32 = arith.constant 0 : i32
    %c0_i32_0 = arith.constant 0 : i32
    %c0_i32_1 = arith.constant 0 : i32
    return %arg1, %c0_i32, %c0_i32_0 : i32, i32, i32
  }
  func.func @transform_2(%arg0: i32, %arg1: i32) -> (i32, i32, i32) {
    %c0_i32 = arith.constant 0 : i32
    %c0_i32_0 = arith.constant 0 : i32
    %c0_i32_1 = arith.constant 0 : i32
    return %arg1, %c0_i32, %c0_i32_0 : i32, i32, i32
  }
  func.func @transform_3(%arg0: i32, %arg1: i32) -> (i32, i32) {
    %c0_i32 = arith.constant 0 : i32
    %c0_i32_0 = arith.constant 0 : i32
    return %arg0, %c0_i32 : i32, i32
  }
}

</mosaic_0001>

<llo_original>
// kernel: highway_forward.1
$region0: #{highway_forward.1}
  #allocation0 [shape = 'u32[]', space=smem, size = 0x4, offset = 0x4, fixed_abs, tag = 'smem constant byte address 0x4 - core index']
  #allocation1 [shape = 'u32[144,128]{1,0:T(1,128)}', space=vmem, size = 0x12000, scoped, tag = 'internal scratch']
  #allocation2 [shape = 'f32[8,128]{1,0:T(8,128)}', space=vmem, size = 0x1000, scoped, tag = 'scratch operand']
  %s0 = inlined_call_operand.hbm [shape: f32[8,128], index: 0, kind: input, shape index: {}]
  %s1 = inlined_call_operand.hbm [shape: bf16[2,128,256], index: 1, kind: input, shape index: {}]
  %s2 = inlined_call_operand.hbm [shape: f32[2,1,256], index: 2, kind: input, shape index: {}]
  %s3 = inlined_call_operand.hbm [shape: f32[8,128], index: 3, kind: output, shape index: {}]
  %s4 = sld [smem:[#allocation0]]
  $region65: #{highway_forward.1} parent=0
    _
  %s6 = ssub.s32 1, %s4
  %s7 = scalar_select 0, %s6, %s4
  $region1: #{highway_forward.1} parent=0
    #allocation3 [shape = 'u8[4096]{0}', space=vmem, size = 0x1000, scoped, tag = 'input window, operand 0, single buffered']
    #allocation4 [shape = 's32[2]{0}', space=sflag, size = 0x8, scoped, tag = 'scoped memory for highway_forward.1']
    #allocation5 [shape = 's32[2]{0}', space=sflag, size = 0x8, scoped, tag = 'scoped memory for highway_forward.1']
    #allocation6 [shape = 'u8[131072]{0}', space=vmem, size = 0x20000, scoped, tag = 'input window, operand 1']
    #allocation7 [shape = 's32[2]{0}', space=sflag, size = 0x8, scoped, tag = 'scoped memory for highway_forward.1']
    #allocation8 [shape = 'u8[2048]{0}', space=vmem, size = 0x800, scoped, tag = 'input window, operand 2']
    #allocation9 [shape = 'u8[4096]{0}', space=vmem, size = 0x1000, scoped, tag = 'output window, operand 0, single buffered']
    %8 = vsyncpa [#allocation4], 0
    %9 = vsyncpa [#allocation7], 0
    %s10 = scalar_lea.sflag [#allocation7], 1
    %11 = vsyncpa %s10, 0
    %12 = vsyncpa [#allocation5], 0
    loop: start=0, step=1, limit=4
    $region2: #{highway_forward.1} parent=1 // loop_pre_header
      _
    $region3: #{highway_forward.1} parent=1 // loop_header
      %s14 = sphi 0, %s18
      %p15 = scmp.ge.s32.totalorder %s14, 4
      %s21 = sphi 0, %s33
      %s22 = sphi 0, %s29
      %s23 = sphi 0, %s21
      %s24 = sphi 0, %s22
      %s25 = sphi 0, %s23
      %s26 = sphi 0, %s24
      %s36 = sphi 0, %s38
      %s39 = sphi 0, %s36
      %s40 = sphi 0, %s39
      %s56 = sphi 0, %s40
      %s62 = sphi 0, %s64
      %s65 = sphi 0, %s62
      %s66 = sphi 0, %s65
      %s82 = sphi 0, %s66
      %s88 = sphi 0, %s90
      %s91 = sphi 0, %s88
      %s92 = sphi 0, %s91
      %s108 = sphi 0, %s92
      %s114 = sphi 0, %s116
      %s117 = sphi 0, %s114
      %s118 = sphi 0, %s117
      %s134 = sphi 0, %s118
    $region4: #{highway_forward.1} parent=1 // loop_header_branch
      %17 = sbr.rel (%p15) target = $region8
    $region5: #{highway_forward.1} parent=1 // loop_body
      %s19 = ssub.s32 %s14, 1
      %s20 = ssub.s32 %s14, 2
      %s27 = sadd.s32 1, %s22
      %p28 = scmp.ge.s32.totalorder %s27, 2
      %s29 = scalar_select %p28, 0, %s27
      %s30 = sadd.s32 1, %s21
      %s31 = scalar_select %p28, %s30, %s21
      %p32 = scmp.ge.s32.totalorder %s31, 1
      %s33 = scalar_select %p32, 0, %s31
      %s34 = ssub.s32 %s21, %s33
      %p35 = scmp.eq.s32.totalorder %s34, 0
      %s37 = sadd.s32 %s36, 1
      %s38 = scalar_select %p35, %s36, %s37
      %p41 = pneg %p35
      %p42 = scmp.eq.s32.totalorder %s14, 1
      %p43 = por %p41, %p42
      %p44 = scmp.ne.s32.totalorder %s36, %s39
      %p45 = scmp.eq.s32.totalorder %s14, 0
      %p46 = por %p44, %p45
      %p47 = scmp.ne.s32.totalorder %s36, %s39
      %p48 = scmp.eq.s32.totalorder %s19, 1
      %p49 = por %p47, %p48
      %p50 = scmp.ne.s32.totalorder %s39, %s40
      %p51 = scmp.eq.s32.totalorder %s19, 0
      %p52 = por %p50, %p51
      %p53 = scmp.ne.s32.totalorder %s39, %s40
      %p54 = scmp.eq.s32.totalorder %s20, 1
      %p55 = por %p53, %p54
      %p57 = scmp.ne.s32.totalorder %s40, %s56
      %p58 = scmp.eq.s32.totalorder %s20, 0
      %p59 = por %p57, %p58
      %s60 = ssub.s32 %s22, %s29
      %p61 = scmp.eq.s32.totalorder %s60, 0
      %s63 = sadd.s32 %s62, 1
      %s64 = scalar_select %p61, %s62, %s63
      %p67 = pneg %p61
      %p68 = scmp.eq.s32.totalorder %s14, 1
      %p69 = por %p67, %p68
      %p70 = scmp.ne.s32.totalorder %s62, %s65
      %p71 = scmp.eq.s32.totalorder %s14, 0
      %p72 = por %p70, %p71
      %p73 = scmp.ne.s32.totalorder %s62, %s65
      %p74 = scmp.eq.s32.totalorder %s19, 1
      %p75 = por %p73, %p74
      %p76 = scmp.ne.s32.totalorder %s65, %s66
      %p77 = scmp.eq.s32.totalorder %s19, 0
      %p78 = por %p76, %p77
      %p79 = scmp.ne.s32.totalorder %s65, %s66
      %p80 = scmp.eq.s32.totalorder %s20, 1
      %p81 = por %p79, %p80
      %p83 = scmp.ne.s32.totalorder %s66, %s82
      %p84 = scmp.eq.s32.totalorder %s20, 0
      %p85 = por %p83, %p84
      %s86 = ssub.s32 %s22, %s29
      %p87 = scmp.eq.s32.totalorder %s86, 0
      %s89 = sadd.s32 %s88, 1
      %s90 = scalar_select %p87, %s88, %s89
      %p93 = pneg %p87
      %p94 = scmp.eq.s32.totalorder %s14, 1
      %p95 = por %p93, %p94
      %p96 = scmp.ne.s32.totalorder %s88, %s91
      %p97 = scmp.eq.s32.totalorder %s14, 0
      %p98 = por %p96, %p97
      %p99 = scmp.ne.s32.totalorder %s88, %s91
      %p100 = scmp.eq.s32.totalorder %s19, 1
      %p101 = por %p99, %p100
      %p102 = scmp.ne.s32.totalorder %s91, %s92
      %p103 = scmp.eq.s32.totalorder %s19, 0
      %p104 = por %p102, %p103
      %p105 = scmp.ne.s32.totalorder %s91, %s92
      %p106 = scmp.eq.s32.totalorder %s20, 1
      %p107 = por %p105, %p106
      %p109 = scmp.ne.s32.totalorder %s92, %s108
      %p110 = scmp.eq.s32.totalorder %s20, 0
      %p111 = por %p109, %p110
      %s112 = ssub.s32 %s21, %s33
      %p113 = scmp.eq.s32.totalorder %s112, 0
      %s115 = sadd.s32 %s114, 1
      %s116 = scalar_select %p113, %s114, %s115
      %p119 = pneg %p113
      %p120 = scmp.eq.s32.totalorder %s14, 1
      %p121 = por %p119, %p120
      %p122 = scmp.ne.s32.totalorder %s114, %s117
      %p123 = scmp.eq.s32.totalorder %s14, 0
      %p124 = por %p122, %p123
      %p125 = scmp.ne.s32.totalorder %s114, %s117
      %p126 = scmp.eq.s32.totalorder %s19, 1
      %p127 = por %p125, %p126
      %p128 = scmp.ne.s32.totalorder %s117, %s118
      %p129 = scmp.eq.s32.totalorder %s19, 0
      %p130 = por %p128, %p129
      %p131 = scmp.ne.s32.totalorder %s117, %s118
      %p132 = scmp.eq.s32.totalorder %s20, 1
      %p133 = por %p131, %p132
      %p135 = scmp.ne.s32.totalorder %s118, %s134
      %p136 = scmp.eq.s32.totalorder %s20, 0
      %p137 = por %p135, %p136
      %p138 = scmp.le.s32.totalorder 1, %s14
      %p139 = scmp.lt.s32.totalorder %s14, 3
      %p140 = pnand %p138, %p139
      %p141 = pneg %p140
      // Predicated region
      $region9: #{highway_forward.1} parent=5 // pred_check
        _
      $region10: #{highway_forward.1} parent=5 // pred_check_branch
        %143 = sbr.rel (%p140) target = $region12
      $region11: #{highway_forward.1} parent=5 // pred_region
        %s144 = ssub.s32 %s14, 1
        // Predicated region
        $region13: #{highway_forward.1} parent=11 // pred_check
          %p145 = pneg %p52
        $region14: #{highway_forward.1} parent=11 // pred_check_branch
          %147 = sbr.rel (%p145) target = $region16
        $region15: #{highway_forward.1} parent=11 // pred_region
          %s149 = ssub.s32 128, 128
          %150 = vsyncadd [#allocation4], %s149
          %s151 = smul.addr %s23, 128
          %s152 = scalar_lea.hbm %s0, %s151
          %s154 = sshll.u32 [#allocation3], 4
          %s155 = int_to_ptr.vmem [resolvable:$true] %s154
          %157 = dma.hbm_to_vmem [thread:$0]  %s152, 128, %s155, [#allocation4]
        $region16: #{highway_forward.1} parent=11 // pred_fallthru
          _
      $region12: #{highway_forward.1} parent=5 // pred_fallthru
        _
      %p158 = scmp.lt.s32.totalorder %s14, 2
      // Predicated region
      $region17: #{highway_forward.1} parent=5 // pred_check
        %p159 = pneg %p158
      $region18: #{highway_forward.1} parent=5 // pred_check_branch
        %161 = sbr.rel (%p159) target = $region20
      $region19: #{highway_forward.1} parent=5 // pred_region
        // Predicated region
        $region21: #{highway_forward.1} parent=19 // pred_check
          %p162 = pneg %p72
        $region22: #{highway_forward.1} parent=19 // pred_check_branch
          %164 = sbr.rel (%p162) target = $region24
        $region23: #{highway_forward.1} parent=19 // pred_region
          %s165 = sand.u32 %s14, 1
          %s166 = scalar_lea.sflag [#allocation7], %s165
          %s167 = sand.u32 %s62, 1
          %s168 = smul.addr %s167, 128
          %s169 = scalar_lea.vmem [#allocation6], %s168
          %s171 = ssub.s32 2048, 2048
          %172 = vsyncadd %s166, %s171
          %s173 = smul.addr %s22, 32
          %s174 = smul.addr %s173, 64
          %s175 = scalar_lea.hbm %s1, %s174
          %s176 = sshll.u32 %s169, 4
          %s177 = int_to_ptr.vmem [resolvable:$true] %s176
          %182 = dma.hbm_to_vmem [thread:$0]  %s175, 2048, %s177, %s166, 128, 128, 8
        $region24: #{highway_forward.1} parent=19 // pred_fallthru
          _
        // Predicated region
        $region25: #{highway_forward.1} parent=19 // pred_check
          %p183 = pneg %p98
        $region26: #{highway_forward.1} parent=19 // pred_check_branch
          %185 = sbr.rel (%p183) target = $region28
        $region27: #{highway_forward.1} parent=19 // pred_region
          %s186 = sand.u32 %s14, 1
          %s187 = scalar_lea.sflag [#allocation7], %s186
          %s188 = sand.u32 %s88, 1
          %s189 = smul.addr %s188, 2
          %s190 = scalar_lea.vmem [#allocation8], %s189
          %s192 = ssub.s32 32, 32
          %193 = vsyncadd %s187, %s192
          %s194 = smul.addr %s22, 2
          %s195 = smul.addr %s194, 16
          %s196 = scalar_lea.hbm %s2, %s195
          %s198 = sshll.u32 %s190, 4
          %s199 = int_to_ptr.vmem [resolvable:$true] %s198
          %201 = dma.hbm_to_vmem [thread:$0]  %s196, 32, %s199, %s187
        $region28: #{highway_forward.1} parent=19 // pred_fallthru
          _
      $region20: #{highway_forward.1} parent=5 // pred_fallthru
        _
      %p202 = scmp.le.s32.totalorder 1, %s14
      %p203 = scmp.lt.s32.totalorder %s14, 3
      %p204 = pnand %p202, %p203
      %p205 = pneg %p204
      // Predicated region
      $region29: #{highway_forward.1} parent=5 // pred_check
        _
      $region30: #{highway_forward.1} parent=5 // pred_check_branch
        %207 = sbr.rel (%p204) target = $region32
      $region31: #{highway_forward.1} parent=5 // pred_region
        %s208 = ssub.s32 %s14, 1
        // Predicated region
        $region33: #{highway_forward.1} parent=31 // pred_check
          %p209 = pneg %p52
        $region34: #{highway_forward.1} parent=31 // pred_check_branch
          %211 = sbr.rel (%p209) target = $region36
        $region35: #{highway_forward.1} parent=31 // pred_region
          %212 = dma.done [#allocation4], 128
        $region36: #{highway_forward.1} parent=31 // pred_fallthru
          _
        %s213 = sand.u32 %s19, 1
        %s214 = scalar_lea.sflag [#allocation7], %s213
        %s215 = sand.u32 %s65, 1
        %s216 = smul.addr %s215, 128
        %s217 = scalar_lea.vmem [#allocation6], %s216
        // Predicated region
        $region37: #{highway_forward.1} parent=31 // pred_check
          %p218 = pneg %p78
        $region38: #{highway_forward.1} parent=31 // pred_check_branch
          %220 = sbr.rel (%p218) target = $region40
        $region39: #{highway_forward.1} parent=31 // pred_region
          %221 = dma.done %s214, 2048
        $region40: #{highway_forward.1} parent=31 // pred_fallthru
          _
        %s222 = sand.u32 %s19, 1
        %s223 = scalar_lea.sflag [#allocation7], %s222
        %s224 = sand.u32 %s91, 1
        %s225 = smul.addr %s224, 2
        %s226 = scalar_lea.vmem [#allocation8], %s225
        // Predicated region
        $region41: #{highway_forward.1} parent=31 // pred_check
          %p227 = pneg %p104
        $region42: #{highway_forward.1} parent=31 // pred_check_branch
          %229 = sbr.rel (%p227) target = $region44
        $region43: #{highway_forward.1} parent=31 // pred_region
          %230 = dma.done %s223, 32
        $region44: #{highway_forward.1} parent=31 // pred_fallthru
          _
        %p231 = pneg %p52
        %p232 = pneg %p49
        %s233 = sand.u32 %s19, 1
        %s234 = scalar_lea.sflag [#allocation7], %s233
        %s235 = sand.u32 %s65, 1
        %s236 = smul.addr %s235, 128
        %s237 = scalar_lea.vmem [#allocation6], %s236
        %p238 = pneg %p78
        %p239 = pneg %p75
        %s240 = sand.u32 %s19, 1
        %s241 = scalar_lea.sflag [#allocation7], %s240
        %s242 = sand.u32 %s91, 1
        %s243 = smul.addr %s242, 2
        %s244 = scalar_lea.vmem [#allocation8], %s243
        %p245 = pneg %p104
        %p246 = pneg %p101
        %p247 = pneg %p130
        %p248 = pneg %p127
        %p250 = scmp.eq.s32.totalorder %s24, 0
        // Predicated region
        $region45: #{highway_forward.1} parent=31 // pred_check
          %p251 = pneg %p250
        $region46: #{highway_forward.1} parent=31 // pred_check_branch
          %253 = sbr.rel (%p251) target = $region48
        $region47: #{highway_forward.1} parent=31 // pred_region
          %v254 = vld [vmem:[#allocation3] sm:$0xff]
          %255 = vst [vmem:[#allocation2] sm:$0xff] %v254
        $region48: #{highway_forward.1} parent=31 // pred_fallthru
          _
        %v256 = vld [vmem:[#allocation2] sm:$0xff]
        %v257 = vpack.c.bf16 %v256, %v256
        %v258 = vld [vmem:[%s217] sm:$0xff]
        %v259 = vld [vmem:[%s217 + $0x8] sm:$0xff]
        %v260 = vld [vmem:[%s217 + $0x10] sm:$0xff]
        %v261 = vld [vmem:[%s217 + $0x18] sm:$0xff]
        %v262 = vld [vmem:[%s217 + $0x20] sm:$0xff]
        %v263 = vld [vmem:[%s217 + $0x28] sm:$0xff]
        %v264 = vld [vmem:[%s217 + $0x30] sm:$0xff]
        %v265 = vld [vmem:[%s217 + $0x38] sm:$0xff]
        %v266 = vld [vmem:[%s217 + $0x40] sm:$0xff]
        %v267 = vld [vmem:[%s217 + $0x48] sm:$0xff]
        %v268 = vld [vmem:[%s217 + $0x50] sm:$0xff]
        %v269 = vld [vmem:[%s217 + $0x58] sm:$0xff]
        %v270 = vld [vmem:[%s217 + $0x60] sm:$0xff]
        %v271 = vld [vmem:[%s217 + $0x68] sm:$0xff]
        %v272 = vld [vmem:[%s217 + $0x70] sm:$0xff]
        %v273 = vld [vmem:[%s217 + $0x78] sm:$0xff]
        %v274 = vld [vmem:[%s226] sm:$0x3]
        %v276 = vlaneseq
        %v277 = vshrl.u32 %v276, 7
        %v278 = vsub.s32 0, %v277
        %v279 = vrot.slane %v274, %v278
        %v280 = vlaneseq
        %v281 = vshrl.u32 %v280, 7
        %v282 = vsub.s32 1, %v281
        %v283 = vrot.slane %v274, %v282
        %v302 = vunpack.c.l.b16 %v258
        %v303 = vunpack.c.h.b16 %v258
        %v304 = vunpack.c.l.b16 %v259
        %v305 = vunpack.c.h.b16 %v259
        %v306 = vunpack.c.l.b16 %v260
        %v307 = vunpack.c.h.b16 %v260
        %v308 = vunpack.c.l.b16 %v261
        %v309 = vunpack.c.h.b16 %v261
        %v310 = vunpack.c.l.b16 %v262
        %v311 = vunpack.c.h.b16 %v262
        %v312 = vunpack.c.l.b16 %v263
        %v313 = vunpack.c.h.b16 %v263
        %v314 = vunpack.c.l.b16 %v264
        %v315 = vunpack.c.h.b16 %v264
        %v316 = vunpack.c.l.b16 %v265
        %v317 = vunpack.c.h.b16 %v265
        %v318 = vunpack.c.l.b16 %v266
        %v319 = vunpack.c.h.b16 %v266
        %v320 = vunpack.c.l.b16 %v267
        %v321 = vunpack.c.h.b16 %v267
        %v322 = vunpack.c.l.b16 %v268
        %v323 = vunpack.c.h.b16 %v268
        %v324 = vunpack.c.l.b16 %v269
        %v325 = vunpack.c.h.b16 %v269
        %v326 = vunpack.c.l.b16 %v270
        %v327 = vunpack.c.h.b16 %v270
        %v328 = vunpack.c.l.b16 %v271
        %v329 = vunpack.c.h.b16 %v271
        %v330 = vunpack.c.l.b16 %v272
        %v331 = vunpack.c.h.b16 %v272
        %v332 = vunpack.c.l.b16 %v273
        %v333 = vunpack.c.h.b16 %v273
        %v334 = vpack.c.b16 %v304, %v302
        %v335 = vpack.c.b16 %v305, %v303
        %v336 = vpack.c.b16 %v308, %v306
        %v337 = vpack.c.b16 %v309, %v307
        %v338 = vpack.c.b16 %v312, %v310
        %v339 = vpack.c.b16 %v313, %v311
        %v340 = vpack.c.b16 %v316, %v314
        %v341 = vpack.c.b16 %v317, %v315
        %v342 = vpack.c.b16 %v320, %v318
        %v343 = vpack.c.b16 %v321, %v319
        %v344 = vpack.c.b16 %v324, %v322
        %v345 = vpack.c.b16 %v325, %v323
        %v346 = vpack.c.b16 %v328, %v326
        %v347 = vpack.c.b16 %v329, %v327
        %v348 = vpack.c.b16 %v332, %v330
        %v349 = vpack.c.b16 %v333, %v331
        %366 = vmatprep.subr.bf16.mxu0 %v349
        %367 = vmatpush1.bf16.msra.mxu0 %v348
        %368 = vmatprep.subr.bf16.mxu0 %v347
        %369 = vmatpush1.bf16.msra.mxu0 %v346
        %370 = vmatprep.subr.bf16.mxu0 %v345
        %371 = vmatpush1.bf16.msra.mxu0 %v344
        %372 = vmatprep.subr.bf16.mxu0 %v343
        %373 = vmatpush1.bf16.msra.mxu0 %v342
        %374 = vmatprep.subr.bf16.mxu0 %v341
        %375 = vmatpush1.bf16.msra.mxu0 %v340
        %376 = vmatprep.subr.bf16.mxu0 %v339
        %377 = vmatpush1.bf16.msra.mxu0 %v338
        %378 = vmatprep.subr.bf16.mxu0 %v337
        %379 = vmatpush1.bf16.msra.mxu0 %v336
        %380 = vmatprep.subr.bf16.mxu0 %v335
        %381 = vmatpush1.bf16.msra.mxu0 %v334
        %382 = vmatprep.subr.bf16.mxu0 0
        %383 = vmatpush2.bf16.msra.mxu0 0
        %384 = vmatprep.subr.bf16.mxu0 0
        %385 = vmatpush2.bf16.msra.mxu0 0
        %386 = vmatprep.subr.bf16.mxu0 0
        %387 = vmatpush2.bf16.msra.mxu0 0
        %388 = vmatprep.subr.bf16.mxu0 0
        %389 = vmatpush2.bf16.msra.mxu0 0
        %390 = vmatprep.subr.bf16.mxu0 0
        %391 = vmatpush2.bf16.msra.mxu0 0
        %392 = vmatprep.subr.bf16.mxu0 0
        %393 = vmatpush2.bf16.msra.mxu0 0
        %394 = vmatprep.subr.bf16.mxu0 0
        %395 = vmatpush2.bf16.msra.mxu0 0
        %396 = vmatprep.subr.bf16.mxu0 0
        %397 = vmatpush2.bf16.msra.mxu0 0
        %398 = vmatprep.mubr.bf16.mxu0 0
        %399 = vmatmul.mubr.bf16.gmra.mxu0 %v257
        %v400 = vpop.f32.mrf.mxu0
        %v401 = vadd.f32 %v279, %v400
        %v402 = vpop.f32.mrf.mxu0
        %v403 = vadd.f32 %v283, %v402
        %v404 = vpop.f32.mrf.mxu0
        %v405 = vpop.f32.mrf.mxu0
        %406 = vdwg.mxu0
        %v407 = vmax.f32 %v401, 0.0
        %v408 = vxor.u32 %v403, 2147483648
        %v409 = vmul.f32 %v408, 1.442695
        %v410 = vpow.pop %v409
        %v411 = vadd.f32 %v410, 1.0
        %v412 = vrcp.pop %v411
        %v413 = vmul.f32 1.0, %v412
        %v414 = vsub.f32 %v407, %v256
        %v415 = vmul.f32 %v413, %v414
        %v416 = vadd.f32 %v256, %v415
        %417 = vst [vmem:[#allocation2] sm:$0xff] %v416
        %p418 = scmp.eq.s32.totalorder %s24, 1
        // Predicated region
        $region49: #{highway_forward.1} parent=31 // pred_check
          %p419 = pneg %p418
        $region50: #{highway_forward.1} parent=31 // pred_check_branch
          %421 = sbr.rel (%p419) target = $region52
        $region51: #{highway_forward.1} parent=31 // pred_region
          %422 = vst [vmem:[#allocation9] sm:$0xff] %v416
        $region52: #{highway_forward.1} parent=31 // pred_fallthru
          _
        // Predicated region
        $region53: #{highway_forward.1} parent=31 // pred_check
          %p423 = pneg %p127
        $region54: #{highway_forward.1} parent=31 // pred_check_branch
          %425 = sbr.rel (%p423) target = $region56
        $region55: #{highway_forward.1} parent=31 // pred_region
          %s427 = ssub.s32 128, 128
          %428 = vsyncadd [#allocation5], %s427
          %s429 = smul.addr %s23, 128
          %s430 = scalar_lea.hbm %s3, %s429
          %s432 = sshll.u32 [#allocation9], 4
          %s433 = int_to_ptr.vmem [resolvable:$true] %s432
          %435 = dma.vmem_to_hbm [thread:$0]  %s433, 128, %s430, [#allocation5]
        $region56: #{highway_forward.1} parent=31 // pred_fallthru
          _
        // Predicated region
        $region57: #{highway_forward.1} parent=31 // pred_check
          %p436 = pneg %p127
        $region58: #{highway_forward.1} parent=31 // pred_check_branch
          %438 = sbr.rel (%p436) target = $region60
        $region59: #{highway_forward.1} parent=31 // pred_region
          %439 = dma.done [#allocation5], 128
        $region60: #{highway_forward.1} parent=31 // pred_fallthru
          _
      $region32: #{highway_forward.1} parent=5 // pred_fallthru
        _
      %p440 = scmp.le.s32.totalorder 2, %s14
      // Predicated region
      $region61: #{highway_forward.1} parent=5 // pred_check
        %p441 = pneg %p440
      $region62: #{highway_forward.1} parent=5 // pred_check_branch
        %443 = sbr.rel (%p441) target = $region64
      $region63: #{highway_forward.1} parent=5 // pred_region
        %s444 = ssub.s32 %s14, 2
      $region64: #{highway_forward.1} parent=5 // pred_fallthru
        _
    $region6: #{highway_forward.1} parent=1 // loop_footer
      %s18 = sadd.s32 1, %s14
    $region7: #{highway_forward.1} parent=1 // loop_footer_branch
      %13 = sbr.rel target = $region3
    $region8: #{highway_forward.1} parent=1 // loop_exit
      _
    %445 = vsyncpa [#allocation4], 1
    %s446 = scalar_lea.sflag [#allocation4], 1
    %447 = vsyncpa %s446, 1
    %448 = vsyncpa [#allocation7], 1
    %s449 = scalar_lea.sflag [#allocation7], 1
    %450 = vsyncpa %s449, 1
    %451 = vsyncpa [#allocation5], 1
    %s452 = scalar_lea.sflag [#allocation5], 1
    %453 = vsyncpa %s452, 1

</llo_original>
